<compile_context>
chip_gen: v6e
topology: v6e:2x2x1
jax: 0.10.0
libtpu: 0.0.40
codegen_flags: <defaults>
</compile_context>

<pallas_src>
import functools

import jax
import jax.numpy as jnp
from jax.experimental import pallas as pl
from jax.experimental.pallas import tpu as pltpu


def gat_kernel(ssrc_ref, sdst_ref, linw_ref, linb_ref, adj_ref, out_ref, *,
               head_n, alpha, binary_adj):
    # Hoisted attention logits (computed once in the wrapper):
    #   s_src[i, h] = x_i . (W[h] @ a_src[h])   for all rows (softmax axis)
    #   s_dst[h, j] = x_j . (W[h] @ a_dst[h])   only for this column tile
    s_src = ssrc_ref[...]                                   # (N_pad, H)
    s_dst = sdst_ref[...]                                   # (H, TN)

    # Start the accumulator at the Linear(head_n, 1) bias (saves one add).
    acc = jnp.full(out_ref.shape, linb_ref[0], dtype=jnp.float32)
    for h in range(head_n):                                 # head_n small & static
        e = s_src[:, h:h + 1] + s_dst[h:h + 1, :]           # (N_pad, TN) logits
        if alpha <= 1.0:
            e = jnp.maximum(e, alpha * e)                   # LeakyReLU, 1 op cheaper
        else:
            e = jnp.where(e > 0, e, alpha * e)
        acc = acc + linw_ref[h] * e                         # Linear(head_n, 1) weight

    adj = adj_ref[...]
    if binary_adj:
        # 0/1 adjacency: adj*mt == mt on edges; skip the per-element multiply.
        scores = jnp.where(adj != 0.0, acc, -1e9)
    else:
        # == adj*mt + mask for the to_dense() adjacency (mask=-1e9 off-edge).
        scores = jnp.where(adj != 0.0, adj * acc, -1e9)

    # softmax over dim 0 (per column); the full column is resident in the block.
    m = jnp.max(scores, axis=0, keepdims=True)
    p = jnp.exp(scores - m)
    denom = jnp.sum(p, axis=0, keepdims=True)               # (1, TN): tiny
    out_ref[...] = p * (1.0 / denom)                        # exact reciprocal


def _vmem_budget():
    """~70% of physical VMEM per TensorCore; conservative fallback for v7x."""
    try:
        cap = getattr(pltpu.get_tpu_info(), "vmem_capacity_bytes", None)
        if cap:
            return min(int(cap * 0.70), 96 * 1024 * 1024)
    except Exception:
        pass
    return 44 * 1024 * 1024                                 # safe on 64 MiB v7x


def _pick_col_tile(n_pad, head_n, budget_bytes):
    """Largest multiple-of-128 column tile whose resident footprint fits the
    budget: 2x adj + 2x out double-buffers, ~3 full-tile f32 temporaries, the
    tiny s_dst tile and the single-buffered s_src constant; capped so the grid
    has >= 2 steps (>= 8 for large graphs) to feed both v7x TensorCores."""
    reserve = budget_bytes // 8 + (1 << 20)                 # compiler scratch headroom
    const_bytes = n_pad * head_n * 4                        # s_src (Buffered(1))
    bytes_per_col = (2 + 2 + 3) * n_pad * 4 + 2 * head_n * 4
    avail = max(budget_bytes - reserve - const_bytes, bytes_per_col * 128)
    tn = min(n_pad, 4096, (avail // bytes_per_col) // 128 * 128)
    if n_pad >= 256:
        tn = min(tn, n_pad // 2)                            # >= 2 grid steps
    if n_pad >= 4096:
        tn = min(tn, max(512, n_pad // 8))                  # >= 8 steps, >=2 KiB bursts
    tn = max(128, (tn // 128) * 128)
    while n_pad % tn:                                       # n_pad is a multiple of 128
        tn -= 128
    return tn


def multi_heads_gat(x, W, a, lin_w, lin_b, adj_dense, alpha, *, binary_adj=False):
    b, n_nodes, s = x.shape
    N = b * n_nodes
    head_n, _, out_dim = W.shape

    # Fold W into the attention vectors (parameter-only einsums), then hoist
    # the logit matmuls out of the kernel: O(N*S*H) once in the wrapper
    # instead of once per grid step inside the O(N^2) kernel.
    p_src = jnp.einsum('hsd,hd->sh', W, a[:, :out_dim]).astype(jnp.float32)  # (S, H)
    p_dst = jnp.einsum('hsd,hd->hs', W, a[:, out_dim:]).astype(jnp.float32)  # (H, S)
    x2 = x.reshape(N, s).astype(jnp.float32)
    s_src = (x2 @ p_src).astype(jnp.float32)                 # (N, H)
    s_dst = (p_dst @ x2.T).astype(jnp.float32)               # (H, N)

    adj = adj_dense.astype(jnp.float32)

    # Pad N to a multiple of 128: lane-dense output stores and clean column
    # tiles.  Padded rows/cols have adj == 0 -> -1e9 scores -> no contribution
    # to real columns; the extra rows/cols are sliced off below.
    n_pad = ((N + 127) // 128) * 128
    if n_pad != N:
        s_src = jnp.pad(s_src, ((0, n_pad - N), (0, 0)))
        s_dst = jnp.pad(s_dst, ((0, 0), (0, n_pad - N)))
        adj = jnp.pad(adj, ((0, n_pad - N), (0, n_pad - N)))

    budget = _vmem_budget()
    tn = _pick_col_tile(n_pad, head_n, budget)
    grid = (n_pad // tn,)

    kernel = functools.partial(gat_kernel, head_n=head_n, alpha=float(alpha),
                               binary_adj=bool(binary_adj))
    smem = pl.BlockSpec(memory_space=pltpu.MemorySpace.SMEM)

    # s_src is identical on every grid step: single-buffer it to save VMEM.
    try:
        ssrc_spec = pl.BlockSpec((n_pad, head_n), lambda j: (0, 0),
                                 pipeline_mode=pl.Buffered(1))
    except TypeError:  # older jax without pipeline_mode support
        ssrc_spec = pl.BlockSpec((n_pad, head_n), lambda j: (0, 0))

    cost = pl.CostEstimate(
        flops=int(n_pad) * int(n_pad) * (5 * head_n + 6),
        transcendentals=int(n_pad) * int(n_pad),
        bytes_accessed=8 * int(n_pad) * int(n_pad) + 8 * int(n_pad) * head_n,
    )

    out = pl.pallas_call(
        kernel,
        out_shape=jax.ShapeDtypeStruct((n_pad, n_pad), jnp.float32),
        grid=grid,
        in_specs=[
            ssrc_spec,                                       # s_src: all rows (softmax axis)
            pl.BlockSpec((head_n, tn), lambda j: (0, j)),    # s_dst: this column tile
            smem,                                            # lin_w  (head_n,)
            smem,                                            # lin_b  (1,)
            pl.BlockSpec((n_pad, tn), lambda j: (0, j)),     # adjacency column tile
        ],
        out_specs=pl.BlockSpec((n_pad, tn), lambda j: (0, j)),
        compiler_params=pltpu.CompilerParams(
            dimension_semantics=("parallel",),               # megacore sharding on v7x
            vmem_limit_bytes=int(budget)),
        cost_estimate=cost,
    )(s_src, s_dst, lin_w.astype(jnp.float32), lin_b.astype(jnp.float32), adj)
    return out[:N, :N]


def reference(x, W, a, lin_w, lin_b, src, dst, values, mask, alpha):
    """Pure-JAX replica of the PyTorch edge-list forward (for checking)."""
    b, n_nodes, s = x.shape
    xf = x.reshape(b * n_nodes, s)
    atts_stack = []
    for h_idx in range(W.shape[0]):
        h = xf @ W[h_idx]
        edge_h = jnp.concatenate([h[src], h[dst]], axis=1)          # (E, 2D)
        atts = edge_h @ a[h_idx]                                    # (E,)
        atts = jnp.where(atts > 0, atts, alpha * atts)
        atts_stack.append(atts)
    mt = jnp.stack(atts_stack, axis=1) @ lin_w + lin_b[0]           # (E,)
    new_values = values * mt
    N = mask.shape[0]
    dense = jnp.zeros((N, N), jnp.float32).at[src, dst].add(new_values)
    return jax.nn.softmax(dense + mask, axis=0)


if __name__ == "__main__":
    import numpy as np

    key = jax.random.PRNGKey(0)
    b, n_nodes, s = 2, 32, 16          # x: (b, n, s); N = b*n = 64 graph nodes
    N = b * n_nodes
    out_dim, head_n = 32, 4
    alpha = 0.2                        # LeakyReLU negative slope

    k1, k2, k3, k4, k5, k6 = jax.random.split(key, 6)

    # deterministic 0/1 adjacency with self loops (a_sparse.to_dense())
    adj = (jax.random.uniform(k1, (N, N)) < 0.15).astype(jnp.float32)
    adj = jnp.maximum(adj, jnp.eye(N, dtype=jnp.float32))
    mask = jnp.where(adj == 0, -1e9, 0.0).astype(jnp.float32)   # reference only

    def xavier_normal(k, shape, fan_in, fan_out, gain=1.414):
        std = gain * (2.0 / (fan_in + fan_out)) ** 0.5
        return (std * jax.random.normal(k, shape)).astype(jnp.float32)

    W = xavier_normal(k2, (head_n, s, out_dim), s, out_dim)          # heads_dict[n, 0]
    a = xavier_normal(k3, (head_n, 2 * out_dim), 1, 2 * out_dim)     # heads_dict[n, 1]
    lin_w = (0.1 * jax.random.normal(k4, (head_n,))).astype(jnp.float32)  # Linear weight
    lin_b = (0.1 * jax.random.normal(k5, (1,))).astype(jnp.float32)       # Linear bias
    x = jax.random.normal(k6, (b, n_nodes, s), dtype=jnp.float32)

    # a_sparse.values() are ones here -> binary adjacency fast path.
    out = multi_heads_gat(x, W, a, lin_w, lin_b, adj, alpha, binary_adj=True)
    out = jax.block_until_ready(out)

    # sanity check against the edge-list (PyTorch-style) reference
    src_np, dst_np = np.nonzero(np.asarray(adj))
    values = jnp.ones(src_np.shape[0], jnp.float32)                  # a_sparse.values()
    ref = reference(x, W, a, lin_w, lin_b,
                    jnp.asarray(src_np), jnp.asarray(dst_np), values, mask, alpha)
    assert out.shape == (N, N)
    assert np.allclose(np.asarray(out), np.asarray(ref), atol=1e-4, rtol=1e-4)
    print("KERNEL_OK")
</pallas_src>

<mosaic_0001>
module attributes {stable_mosaic.version = 11 : i64} {
  func.func @gat_kernel(%arg0: i32, %arg1: memref<128x4xf32, #tpu.memory_space<vmem>>, %arg2: memref<4x128xf32, #tpu.memory_space<vmem>>, %arg3: memref<4xf32, #tpu.memory_space<smem>>, %arg4: memref<1xf32, #tpu.memory_space<smem>>, %arg5: memref<128x128xf32, #tpu.memory_space<vmem>>, %arg6: memref<128x128xf32, #tpu.memory_space<vmem>>) attributes {dimension_semantics = [#tpu.dimension_semantics<parallel>], iteration_bounds = array<i64: 1>, scalar_prefetch = 0 : i64, scratch_operands = 0 : i64, tpu.core_type = #tpu.core_type<tc>, window_params = [{pipeline_mode = #tpu.pipeline_mode<synchronous>, transform_indices = @transform_0, window_bounds = array<i64: 128, 4>}, {transform_indices = @transform_1, window_bounds = array<i64: 4, 128>}, {transform_indices = @transform_2, window_bounds = array<i64: 4>}, {transform_indices = @transform_3, window_bounds = array<i64: 1>}, {transform_indices = @transform_4, window_bounds = array<i64: 128, 128>}, {transform_indices = @transform_5, window_bounds = array<i64: 128, 128>}]} {
    %c0 = arith.constant 0 : index
    %c0_0 = arith.constant 0 : index
    %0 = vector.load %arg1[%c0, %c0_0] : memref<128x4xf32, #tpu.memory_space<vmem>>, vector<128x4xf32>
    %c0_1 = arith.constant 0 : index
    %c0_2 = arith.constant 0 : index
    %1 = vector.load %arg2[%c0_1, %c0_2] : memref<4x128xf32, #tpu.memory_space<vmem>>, vector<4x128xf32>
    %c0_3 = arith.constant 0 : index
    %2 = memref.load %arg4[%c0_3] : memref<1xf32, #tpu.memory_space<smem>>
    %3 = vector.broadcast %2 : f32 to vector<128x128xf32>
    %4 = vector.extract_strided_slice %0 {offsets = [0, 0], sizes = [128, 1], strides = [1, 1]} : vector<128x4xf32> to vector<128x1xf32>
    %5 = vector.extract_strided_slice %1 {offsets = [0, 0], sizes = [1, 128], strides = [1, 1]} : vector<4x128xf32> to vector<1x128xf32>
    %6 = vector.broadcast %4 : vector<128x1xf32> to vector<128x128xf32>
    %7 = vector.broadcast %5 : vector<1x128xf32> to vector<128x128xf32>
    %8 = arith.addf %6, %7 : vector<128x128xf32>
    %cst = arith.constant 2.000000e-01 : f32
    %9 = vector.broadcast %cst : f32 to vector<128x128xf32>
    %10 = arith.mulf %9, %8 : vector<128x128xf32>
    %11 = arith.maximumf %8, %10 : vector<128x128xf32>
    %c0_4 = arith.constant 0 : index
    %12 = memref.load %arg3[%c0_4] : memref<4xf32, #tpu.memory_space<smem>>
    %13 = vector.broadcast %12 : f32 to vector<128x128xf32>
    %14 = arith.mulf %13, %11 : vector<128x128xf32>
    %15 = arith.addf %3, %14 : vector<128x128xf32>
    %16 = vector.extract_strided_slice %0 {offsets = [0, 1], sizes = [128, 1], strides = [1, 1]} : vector<128x4xf32> to vector<128x1xf32>
    %17 = vector.extract_strided_slice %1 {offsets = [1, 0], sizes = [1, 128], strides = [1, 1]} : vector<4x128xf32> to vector<1x128xf32>
    %18 = vector.broadcast %16 : vector<128x1xf32> to vector<128x128xf32>
    %19 = vector.broadcast %17 : vector<1x128xf32> to vector<128x128xf32>
    %20 = arith.addf %18, %19 : vector<128x128xf32>
    %cst_5 = arith.constant 2.000000e-01 : f32
    %21 = vector.broadcast %cst_5 : f32 to vector<128x128xf32>
    %22 = arith.mulf %21, %20 : vector<128x128xf32>
    %23 = arith.maximumf %20, %22 : vector<128x128xf32>
    %c1 = arith.constant 1 : index
    %24 = memref.load %arg3[%c1] : memref<4xf32, #tpu.memory_space<smem>>
    %25 = vector.broadcast %24 : f32 to vector<128x128xf32>
    %26 = arith.mulf %25, %23 : vector<128x128xf32>
    %27 = arith.addf %15, %26 : vector<128x128xf32>
    %28 = vector.extract_strided_slice %0 {offsets = [0, 2], sizes = [128, 1], strides = [1, 1]} : vector<128x4xf32> to vector<128x1xf32>
    %29 = vector.extract_strided_slice %1 {offsets = [2, 0], sizes = [1, 128], strides = [1, 1]} : vector<4x128xf32> to vector<1x128xf32>
    %30 = vector.broadcast %28 : vector<128x1xf32> to vector<128x128xf32>
    %31 = vector.broadcast %29 : vector<1x128xf32> to vector<128x128xf32>
    %32 = arith.addf %30, %31 : vector<128x128xf32>
    %cst_6 = arith.constant 2.000000e-01 : f32
    %33 = vector.broadcast %cst_6 : f32 to vector<128x128xf32>
    %34 = arith.mulf %33, %32 : vector<128x128xf32>
    %35 = arith.maximumf %32, %34 : vector<128x128xf32>
    %c2 = arith.constant 2 : index
    %36 = memref.load %arg3[%c2] : memref<4xf32, #tpu.memory_space<smem>>
    %37 = vector.broadcast %36 : f32 to vector<128x128xf32>
    %38 = arith.mulf %37, %35 : vector<128x128xf32>
    %39 = arith.addf %27, %38 : vector<128x128xf32>
    %40 = vector.extract_strided_slice %0 {offsets = [0, 3], sizes = [128, 1], strides = [1, 1]} : vector<128x4xf32> to vector<128x1xf32>
    %41 = vector.extract_strided_slice %1 {offsets = [3, 0], sizes = [1, 128], strides = [1, 1]} : vector<4x128xf32> to vector<1x128xf32>
    %42 = vector.broadcast %40 : vector<128x1xf32> to vector<128x128xf32>
    %43 = vector.broadcast %41 : vector<1x128xf32> to vector<128x128xf32>
    %44 = arith.addf %42, %43 : vector<128x128xf32>
    %cst_7 = arith.constant 2.000000e-01 : f32
    %45 = vector.broadcast %cst_7 : f32 to vector<128x128xf32>
    %46 = arith.mulf %45, %44 : vector<128x128xf32>
    %47 = arith.maximumf %44, %46 : vector<128x128xf32>
    %c3 = arith.constant 3 : index
    %48 = memref.load %arg3[%c3] : memref<4xf32, #tpu.memory_space<smem>>
    %49 = vector.broadcast %48 : f32 to vector<128x128xf32>
    %50 = arith.mulf %49, %47 : vector<128x128xf32>
    %51 = arith.addf %39, %50 : vector<128x128xf32>
    %c0_8 = arith.constant 0 : index
    %c0_9 = arith.constant 0 : index
    %52 = vector.load %arg5[%c0_8, %c0_9] : memref<128x128xf32, #tpu.memory_space<vmem>>, vector<128x128xf32>
    %cst_10 = arith.constant 0.000000e+00 : f32
    %53 = vector.broadcast %cst_10 : f32 to vector<128x128xf32>
    %54 = arith.cmpf one, %52, %53 : vector<128x128xf32>
    %cst_11 = arith.constant -1.000000e+09 : f32
    %55 = vector.broadcast %cst_11 : f32 to vector<128x128xf32>
    %56 = arith.select %54, %51, %55 : vector<128x128xi1>, vector<128x128xf32>
    %cst_12 = arith.constant dense<0xFF800000> : vector<128xf32>
    %57 = vector.multi_reduction <maximumf>, %56, %cst_12 [0] : vector<128x128xf32> to vector<128xf32>
    %58 = vector.shape_cast %57 : vector<128xf32> to vector<1x128xf32>
    %59 = vector.broadcast %58 : vector<1x128xf32> to vector<128x128xf32>
    %60 = arith.subf %56, %59 : vector<128x128xf32>
    %61 = math.exp %60 : vector<128x128xf32>
    %cst_13 = arith.constant dense<0.000000e+00> : vector<128xf32>
    %62 = vector.multi_reduction <add>, %61, %cst_13 [0] : vector<128x128xf32> to vector<128xf32>
    %63 = vector.shape_cast %62 : vector<128xf32> to vector<1x128xf32>
    %cst_14 = arith.constant 1.000000e+00 : f32
    %64 = vector.broadcast %cst_14 : f32 to vector<1x128xf32>
    %65 = arith.divf %64, %63 : vector<1x128xf32>
    %66 = vector.broadcast %65 : vector<1x128xf32> to vector<128x128xf32>
    %67 = arith.mulf %61, %66 : vector<128x128xf32>
    %c0_15 = arith.constant 0 : index
    %c0_16 = arith.constant 0 : index
    %68 = vector.load %arg6[%c0_15, %c0_16] : memref<128x128xf32, #tpu.memory_space<vmem>>, vector<128x128xf32>
    tpu.vector_store %arg6[%c0_15, %c0_16], %67 {strides = array<i32>} : memref<128x128xf32, #tpu.memory_space<vmem>>, vector<128x128xf32>,
    return
  }
  func.func @transform_0(%arg0: i32) -> (i32, i32) {
    %c0_i32 = arith.constant 0 : i32
    %c0_i32_0 = arith.constant 0 : i32
    %c0_i32_1 = arith.constant 0 : i32
    return %c0_i32, %c0_i32_0 : i32, i32
  }
  func.func @transform_1(%arg0: i32) -> (i32, i32) {
    %c0_i32 = arith.constant 0 : i32
    %c0_i32_0 = arith.constant 0 : i32
    return %c0_i32, %arg0 : i32, i32
  }
  func.func @transform_2(%arg0: i32) -> i32 {
    %c0_i32 = arith.constant 0 : i32
    %c0_i32_0 = arith.constant 0 : i32
    return %c0_i32 : i32
  }
  func.func @transform_3(%arg0: i32) -> i32 {
    %c0_i32 = arith.constant 0 : i32
    %c0_i32_0 = arith.constant 0 : i32
    return %c0_i32 : i32
  }
  func.func @transform_4(%arg0: i32) -> (i32, i32) {
    %c0_i32 = arith.constant 0 : i32
    %c0_i32_0 = arith.constant 0 : i32
    return %c0_i32, %arg0 : i32, i32
  }
  func.func @transform_5(%arg0: i32) -> (i32, i32) {
    %c0_i32 = arith.constant 0 : i32
    %c0_i32_0 = arith.constant 0 : i32
    return %c0_i32, %arg0 : i32, i32
  }
}

</mosaic_0001>

<llo_original>
// kernel: tpu_custom_call.1
$region0: #{tpu_custom_call.1}
  #allocation0 [shape = 'u32[]', space=smem, size = 0x4, offset = 0x4, fixed_abs, tag = 'smem constant byte address 0x4 - core index']
  #allocation1 [shape = 'u32[144,128]{1,0:T(1,128)}', space=vmem, size = 0x12000, scoped, tag = 'internal scratch']
  #allocation2 [shape = 'f32[1]{0:T(128)S(6)}', space=smem, size = 0x200, scoped, tag = 'scoped memory for tpu_custom_call.1']
  %s0 = inlined_call_operand.vmem [shape: f32[128,4], index: 0, kind: input, shape index: {}]
  %s1 = inlined_call_operand.vmem [shape: f32[4,128], index: 1, kind: input, shape index: {}]
  %s2 = inlined_call_operand.vmem [shape: f32[4], index: 2, kind: input, shape index: {}]
  %s3 = inlined_call_operand.<no memory space> [shape: f32[1], index: 3, kind: input, shape index: {}]
  %s4 = inlined_call_operand.vmem [shape: f32[128,128], index: 4, kind: input, shape index: {}]
  %s5 = inlined_call_operand.hbm [shape: f32[128,128], index: 5, kind: output, shape index: {}]
  %s6 = sld [smem:[#allocation0]]
  $region34: #{tpu_custom_call.1} parent=0
    _
  %s8 = ssub.s32 1, %s6
  %s9 = scalar_select 0, %s8, %s6
  %10 = sst [smem:[#allocation2]] %s3
  $region1: #{tpu_custom_call.1} parent=0
    #allocation3 [shape = 'u8[512]{0}', space=smem, size = 0x200, scoped, tag = 'input window, operand 2, single buffered']
    #allocation4 [shape = 's32[1]{0}', space=sflag, size = 0x4, scoped, tag = 'scoped memory for tpu_custom_call.1']
    #allocation5 [shape = 's32[1]{0}', space=sflag, size = 0x4, scoped, tag = 'scoped memory for tpu_custom_call.1']
    #allocation6 [shape = 'u8[65536]{0}', space=vmem, size = 0x10000, scoped, tag = 'output window, operand 0, single buffered']
    %11 = vsyncpa [#allocation5], 0
    %12 = vsyncpa [#allocation4], 0
    // Predicated region
    $region2: #{tpu_custom_call.1} parent=1 // pred_check
      _
    $region3: #{tpu_custom_call.1} parent=1 // pred_check_branch
      %14 = sbr.rel (0) target = $region5
    $region4: #{tpu_custom_call.1} parent=1 // pred_region
      _
    $region5: #{tpu_custom_call.1} parent=1 // pred_fallthru
      _
    // Predicated region
    $region6: #{tpu_custom_call.1} parent=1 // pred_check
      _
    $region7: #{tpu_custom_call.1} parent=1 // pred_check_branch
      %16 = sbr.rel (0) target = $region9
    $region8: #{tpu_custom_call.1} parent=1 // pred_region
      _
    $region9: #{tpu_custom_call.1} parent=1 // pred_fallthru
      _
    // Predicated region
    $region10: #{tpu_custom_call.1} parent=1 // pred_check
      _
    $region11: #{tpu_custom_call.1} parent=1 // pred_check_branch
      %18 = sbr.rel (0) target = $region13
    $region12: #{tpu_custom_call.1} parent=1 // pred_region
      %s20 = ssub.s32 16, 16
      %21 = vsyncadd [#allocation5], %s20
      %s23 = sshll.u32 %s2, 4
      %s24 = int_to_ptr.vmem [resolvable:$true] %s23
      %26 = dma.vmem_to_smem %s24, 16, [#allocation3], [#allocation5]
    $region13: #{tpu_custom_call.1} parent=1 // pred_fallthru
      _
    // Predicated region
    $region14: #{tpu_custom_call.1} parent=1 // pred_check
      _
    $region15: #{tpu_custom_call.1} parent=1 // pred_check_branch
      %28 = sbr.rel (0) target = $region17
    $region16: #{tpu_custom_call.1} parent=1 // pred_region
      _
    $region17: #{tpu_custom_call.1} parent=1 // pred_fallthru
      _
    // Predicated region
    $region18: #{tpu_custom_call.1} parent=1 // pred_check
      _
    $region19: #{tpu_custom_call.1} parent=1 // pred_check_branch
      %30 = sbr.rel (0) target = $region21
    $region20: #{tpu_custom_call.1} parent=1 // pred_region
      _
    $region21: #{tpu_custom_call.1} parent=1 // pred_fallthru
      _
    // Predicated region
    $region22: #{tpu_custom_call.1} parent=1 // pred_check
      _
    $region23: #{tpu_custom_call.1} parent=1 // pred_check_branch
      %32 = sbr.rel (0) target = $region25
    $region24: #{tpu_custom_call.1} parent=1 // pred_region
      %33 = dma.done [#allocation5], 16
    $region25: #{tpu_custom_call.1} parent=1 // pred_fallthru
      _
    %34 = sfence
    %v35 = vld [vmem:[%s0] sm:$0xff]
    %v36 = vld [vmem:[%s0 + $0x8] sm:$0xff]
    %v37 = vld [vmem:[%s0 + $0x10] sm:$0xff]
    %v38 = vld [vmem:[%s0 + $0x18] sm:$0xff]
    %v39 = vld [vmem:[%s0 + $0x20] sm:$0xff]
    %v40 = vld [vmem:[%s0 + $0x28] sm:$0xff]
    %v41 = vld [vmem:[%s0 + $0x30] sm:$0xff]
    %v42 = vld [vmem:[%s0 + $0x38] sm:$0xff]
    %v43 = vld [vmem:[%s0 + $0x40] sm:$0xff]
    %v44 = vld [vmem:[%s0 + $0x48] sm:$0xff]
    %v45 = vld [vmem:[%s0 + $0x50] sm:$0xff]
    %v46 = vld [vmem:[%s0 + $0x58] sm:$0xff]
    %v47 = vld [vmem:[%s0 + $0x60] sm:$0xff]
    %v48 = vld [vmem:[%s0 + $0x68] sm:$0xff]
    %v49 = vld [vmem:[%s0 + $0x70] sm:$0xff]
    %v50 = vld [vmem:[%s0 + $0x78] sm:$0xff]
    %v51 = vld [vmem:[%s1] sm:$0xf]
    %s52 = sld [smem:[#allocation2]]
    %v53 = vstv %s52
    %55 = vset.pattern.permute.xlu0 0
    %56 = vperm.xlu0 %55, %v35
    %v57 = vpop.permute.xlu0 %56
    %60 = vset.pattern.permute.xlu0 0
    %61 = vperm.xlu0 %60, %v36
    %v62 = vpop.permute.xlu0 %61
    %65 = vset.pattern.permute.xlu0 0
    %66 = vperm.xlu0 %65, %v37
    %v67 = vpop.permute.xlu0 %66
    %70 = vset.pattern.permute.xlu0 0
    %71 = vperm.xlu0 %70, %v38
    %v72 = vpop.permute.xlu0 %71
    %75 = vset.pattern.permute.xlu0 0
    %76 = vperm.xlu0 %75, %v39
    %v77 = vpop.permute.xlu0 %76
    %80 = vset.pattern.permute.xlu0 0
    %81 = vperm.xlu0 %80, %v40
    %v82 = vpop.permute.xlu0 %81
    %85 = vset.pattern.permute.xlu0 0
    %86 = vperm.xlu0 %85, %v41
    %v87 = vpop.permute.xlu0 %86
    %90 = vset.pattern.permute.xlu0 0
    %91 = vperm.xlu0 %90, %v42
    %v92 = vpop.permute.xlu0 %91
    %95 = vset.pattern.permute.xlu0 0
    %96 = vperm.xlu0 %95, %v43
    %v97 = vpop.permute.xlu0 %96
    %100 = vset.pattern.permute.xlu0 0
    %101 = vperm.xlu0 %100, %v44
    %v102 = vpop.permute.xlu0 %101
    %105 = vset.pattern.permute.xlu0 0
    %106 = vperm.xlu0 %105, %v45
    %v107 = vpop.permute.xlu0 %106
    %110 = vset.pattern.permute.xlu0 0
    %111 = vperm.xlu0 %110, %v46
    %v112 = vpop.permute.xlu0 %111
    %115 = vset.pattern.permute.xlu0 0
    %116 = vperm.xlu0 %115, %v47
    %v117 = vpop.permute.xlu0 %116
    %120 = vset.pattern.permute.xlu0 0
    %121 = vperm.xlu0 %120, %v48
    %v122 = vpop.permute.xlu0 %121
    %125 = vset.pattern.permute.xlu0 0
    %126 = vperm.xlu0 %125, %v49
    %v127 = vpop.permute.xlu0 %126
    %130 = vset.pattern.permute.xlu0 0
    %131 = vperm.xlu0 %130, %v50
    %v132 = vpop.permute.xlu0 %131
    %v134 = vlaneseq
    %v135 = vshrl.u32 %v134, 7
    %v136 = vsub.s32 0, %v135
    %v137 = vrot.slane %v51, %v136
    %v138 = vadd.f32 %v57, %v137
    %v139 = vadd.f32 %v62, %v137
    %v140 = vadd.f32 %v67, %v137
    %v141 = vadd.f32 %v72, %v137
    %v142 = vadd.f32 %v77, %v137
    %v143 = vadd.f32 %v82, %v137
    %v144 = vadd.f32 %v87, %v137
    %v145 = vadd.f32 %v92, %v137
    %v146 = vadd.f32 %v97, %v137
    %v147 = vadd.f32 %v102, %v137
    %v148 = vadd.f32 %v107, %v137
    %v149 = vadd.f32 %v112, %v137
    %v150 = vadd.f32 %v117, %v137
    %v151 = vadd.f32 %v122, %v137
    %v152 = vadd.f32 %v127, %v137
    %v153 = vadd.f32 %v132, %v137
    %v154 = vmul.f32 %v138, 0.2
    %v155 = vmul.f32 %v139, 0.2
    %v156 = vmul.f32 %v140, 0.2
    %v157 = vmul.f32 %v141, 0.2
    %v158 = vmul.f32 %v142, 0.2
    %v159 = vmul.f32 %v143, 0.2
    %v160 = vmul.f32 %v144, 0.2
    %v161 = vmul.f32 %v145, 0.2
    %v162 = vmul.f32 %v146, 0.2
    %v163 = vmul.f32 %v147, 0.2
    %v164 = vmul.f32 %v148, 0.2
    %v165 = vmul.f32 %v149, 0.2
    %v166 = vmul.f32 %v150, 0.2
    %v167 = vmul.f32 %v151, 0.2
    %v168 = vmul.f32 %v152, 0.2
    %v169 = vmul.f32 %v153, 0.2
    %v170 = vmax.f32 %v138, %v154
    %v171 = vmax.f32 %v139, %v155
    %v172 = vmax.f32 %v140, %v156
    %v173 = vmax.f32 %v141, %v157
    %v174 = vmax.f32 %v142, %v158
    %v175 = vmax.f32 %v143, %v159
    %v176 = vmax.f32 %v144, %v160
    %v177 = vmax.f32 %v145, %v161
    %v178 = vmax.f32 %v146, %v162
    %v179 = vmax.f32 %v147, %v163
    %v180 = vmax.f32 %v148, %v164
    %v181 = vmax.f32 %v149, %v165
    %v182 = vmax.f32 %v150, %v166
    %v183 = vmax.f32 %v151, %v167
    %v184 = vmax.f32 %v152, %v168
    %v185 = vmax.f32 %v153, %v169
    %s186 = sld [smem:[#allocation3]]
    %v187 = vstv %s186
    %v188 = vmul.f32 %v187, %v170
    %v189 = vmul.f32 %v187, %v171
    %v190 = vmul.f32 %v187, %v172
    %v191 = vmul.f32 %v187, %v173
    %v192 = vmul.f32 %v187, %v174
    %v193 = vmul.f32 %v187, %v175
    %v194 = vmul.f32 %v187, %v176
    %v195 = vmul.f32 %v187, %v177
    %v196 = vmul.f32 %v187, %v178
    %v197 = vmul.f32 %v187, %v179
    %v198 = vmul.f32 %v187, %v180
    %v199 = vmul.f32 %v187, %v181
    %v200 = vmul.f32 %v187, %v182
    %v201 = vmul.f32 %v187, %v183
    %v202 = vmul.f32 %v187, %v184
    %v203 = vmul.f32 %v187, %v185
    %v204 = vadd.f32 %v53, %v188
    %v205 = vadd.f32 %v53, %v189
    %v206 = vadd.f32 %v53, %v190
    %v207 = vadd.f32 %v53, %v191
    %v208 = vadd.f32 %v53, %v192
    %v209 = vadd.f32 %v53, %v193
    %v210 = vadd.f32 %v53, %v194
    %v211 = vadd.f32 %v53, %v195
    %v212 = vadd.f32 %v53, %v196
    %v213 = vadd.f32 %v53, %v197
    %v214 = vadd.f32 %v53, %v198
    %v215 = vadd.f32 %v53, %v199
    %v216 = vadd.f32 %v53, %v200
    %v217 = vadd.f32 %v53, %v201
    %v218 = vadd.f32 %v53, %v202
    %v219 = vadd.f32 %v53, %v203
    %220 = vset.pattern.permute.xlu0 1
    %221 = vperm.xlu0 %220, %v35
    %v222 = vpop.permute.xlu0 %221
    %224 = vset.pattern.permute.xlu0 1
    %225 = vperm.xlu0 %224, %v36
    %v226 = vpop.permute.xlu0 %225
    %228 = vset.pattern.permute.xlu0 1
    %229 = vperm.xlu0 %228, %v37
    %v230 = vpop.permute.xlu0 %229
    %232 = vset.pattern.permute.xlu0 1
    %233 = vperm.xlu0 %232, %v38
    %v234 = vpop.permute.xlu0 %233
    %236 = vset.pattern.permute.xlu0 1
    %237 = vperm.xlu0 %236, %v39
    %v238 = vpop.permute.xlu0 %237
    %240 = vset.pattern.permute.xlu0 1
    %241 = vperm.xlu0 %240, %v40
    %v242 = vpop.permute.xlu0 %241
    %244 = vset.pattern.permute.xlu0 1
    %245 = vperm.xlu0 %244, %v41
    %v246 = vpop.permute.xlu0 %245
    %248 = vset.pattern.permute.xlu0 1
    %249 = vperm.xlu0 %248, %v42
    %v250 = vpop.permute.xlu0 %249
    %252 = vset.pattern.permute.xlu0 1
    %253 = vperm.xlu0 %252, %v43
    %v254 = vpop.permute.xlu0 %253
    %256 = vset.pattern.permute.xlu0 1
    %257 = vperm.xlu0 %256, %v44
    %v258 = vpop.permute.xlu0 %257
    %260 = vset.pattern.permute.xlu0 1
    %261 = vperm.xlu0 %260, %v45
    %v262 = vpop.permute.xlu0 %261
    %264 = vset.pattern.permute.xlu0 1
    %265 = vperm.xlu0 %264, %v46
    %v266 = vpop.permute.xlu0 %265
    %268 = vset.pattern.permute.xlu0 1
    %269 = vperm.xlu0 %268, %v47
    %v270 = vpop.permute.xlu0 %269
    %272 = vset.pattern.permute.xlu0 1
    %273 = vperm.xlu0 %272, %v48
    %v274 = vpop.permute.xlu0 %273
    %276 = vset.pattern.permute.xlu0 1
    %277 = vperm.xlu0 %276, %v49
    %v278 = vpop.permute.xlu0 %277
    %280 = vset.pattern.permute.xlu0 1
    %281 = vperm.xlu0 %280, %v50
    %v282 = vpop.permute.xlu0 %281
    %v284 = vlaneseq
    %v285 = vshrl.u32 %v284, 7
    %v286 = vsub.s32 1, %v285
    %v287 = vrot.slane %v51, %v286
    %v288 = vadd.f32 %v222, %v287
    %v289 = vadd.f32 %v226, %v287
    %v290 = vadd.f32 %v230, %v287
    %v291 = vadd.f32 %v234, %v287
    %v292 = vadd.f32 %v238, %v287
    %v293 = vadd.f32 %v242, %v287
    %v294 = vadd.f32 %v246, %v287
    %v295 = vadd.f32 %v250, %v287
    %v296 = vadd.f32 %v254, %v287
    %v297 = vadd.f32 %v258, %v287
    %v298 = vadd.f32 %v262, %v287
    %v299 = vadd.f32 %v266, %v287
    %v300 = vadd.f32 %v270, %v287
    %v301 = vadd.f32 %v274, %v287
    %v302 = vadd.f32 %v278, %v287
    %v303 = vadd.f32 %v282, %v287
    %v304 = vmul.f32 %v288, 0.2
    %v305 = vmul.f32 %v289, 0.2
    %v306 = vmul.f32 %v290, 0.2
    %v307 = vmul.f32 %v291, 0.2
    %v308 = vmul.f32 %v292, 0.2
    %v309 = vmul.f32 %v293, 0.2
    %v310 = vmul.f32 %v294, 0.2
    %v311 = vmul.f32 %v295, 0.2
    %v312 = vmul.f32 %v296, 0.2
    %v313 = vmul.f32 %v297, 0.2
    %v314 = vmul.f32 %v298, 0.2
    %v315 = vmul.f32 %v299, 0.2
    %v316 = vmul.f32 %v300, 0.2
    %v317 = vmul.f32 %v301, 0.2
    %v318 = vmul.f32 %v302, 0.2
    %v319 = vmul.f32 %v303, 0.2
    %v320 = vmax.f32 %v288, %v304
    %v321 = vmax.f32 %v289, %v305
    %v322 = vmax.f32 %v290, %v306
    %v323 = vmax.f32 %v291, %v307
    %v324 = vmax.f32 %v292, %v308
    %v325 = vmax.f32 %v293, %v309
    %v326 = vmax.f32 %v294, %v310
    %v327 = vmax.f32 %v295, %v311
    %v328 = vmax.f32 %v296, %v312
    %v329 = vmax.f32 %v297, %v313
    %v330 = vmax.f32 %v298, %v314
    %v331 = vmax.f32 %v299, %v315
    %v332 = vmax.f32 %v300, %v316
    %v333 = vmax.f32 %v301, %v317
    %v334 = vmax.f32 %v302, %v318
    %v335 = vmax.f32 %v303, %v319
    %s336 = sld [smem:[#allocation3 + $0x1]]
    %v337 = vstv %s336
    %v338 = vmul.f32 %v337, %v320
    %v339 = vmul.f32 %v337, %v321
    %v340 = vmul.f32 %v337, %v322
    %v341 = vmul.f32 %v337, %v323
    %v342 = vmul.f32 %v337, %v324
    %v343 = vmul.f32 %v337, %v325
    %v344 = vmul.f32 %v337, %v326
    %v345 = vmul.f32 %v337, %v327
    %v346 = vmul.f32 %v337, %v328
    %v347 = vmul.f32 %v337, %v329
    %v348 = vmul.f32 %v337, %v330
    %v349 = vmul.f32 %v337, %v331
    %v350 = vmul.f32 %v337, %v332
    %v351 = vmul.f32 %v337, %v333
    %v352 = vmul.f32 %v337, %v334
    %v353 = vmul.f32 %v337, %v335
    %v354 = vadd.f32 %v204, %v338
    %v355 = vadd.f32 %v205, %v339
    %v356 = vadd.f32 %v206, %v340
    %v357 = vadd.f32 %v207, %v341
    %v358 = vadd.f32 %v208, %v342
    %v359 = vadd.f32 %v209, %v343
    %v360 = vadd.f32 %v210, %v344
    %v361 = vadd.f32 %v211, %v345
    %v362 = vadd.f32 %v212, %v346
    %v363 = vadd.f32 %v213, %v347
    %v364 = vadd.f32 %v214, %v348
    %v365 = vadd.f32 %v215, %v349
    %v366 = vadd.f32 %v216, %v350
    %v367 = vadd.f32 %v217, %v351
    %v368 = vadd.f32 %v218, %v352
    %v369 = vadd.f32 %v219, %v353
    %370 = vset.pattern.permute.xlu0 2
    %371 = vperm.xlu0 %370, %v35
    %v372 = vpop.permute.xlu0 %371
    %374 = vset.pattern.permute.xlu0 2
    %375 = vperm.xlu0 %374, %v36
    %v376 = vpop.permute.xlu0 %375
    %378 = vset.pattern.permute.xlu0 2
    %379 = vperm.xlu0 %378, %v37
    %v380 = vpop.permute.xlu0 %379
    %382 = vset.pattern.permute.xlu0 2
    %383 = vperm.xlu0 %382, %v38
    %v384 = vpop.permute.xlu0 %383
    %386 = vset.pattern.permute.xlu0 2
    %387 = vperm.xlu0 %386, %v39
    %v388 = vpop.permute.xlu0 %387
    %390 = vset.pattern.permute.xlu0 2
    %391 = vperm.xlu0 %390, %v40
    %v392 = vpop.permute.xlu0 %391
    %394 = vset.pattern.permute.xlu0 2
    %395 = vperm.xlu0 %394, %v41
    %v396 = vpop.permute.xlu0 %395
    %398 = vset.pattern.permute.xlu0 2
    %399 = vperm.xlu0 %398, %v42
    %v400 = vpop.permute.xlu0 %399
    %402 = vset.pattern.permute.xlu0 2
    %403 = vperm.xlu0 %402, %v43
    %v404 = vpop.permute.xlu0 %403
    %406 = vset.pattern.permute.xlu0 2
    %407 = vperm.xlu0 %406, %v44
    %v408 = vpop.permute.xlu0 %407
    %410 = vset.pattern.permute.xlu0 2
    %411 = vperm.xlu0 %410, %v45
    %v412 = vpop.permute.xlu0 %411
    %414 = vset.pattern.permute.xlu0 2
    %415 = vperm.xlu0 %414, %v46
    %v416 = vpop.permute.xlu0 %415
    %418 = vset.pattern.permute.xlu0 2
    %419 = vperm.xlu0 %418, %v47
    %v420 = vpop.permute.xlu0 %419
    %422 = vset.pattern.permute.xlu0 2
    %423 = vperm.xlu0 %422, %v48
    %v424 = vpop.permute.xlu0 %423
    %426 = vset.pattern.permute.xlu0 2
    %427 = vperm.xlu0 %426, %v49
    %v428 = vpop.permute.xlu0 %427
    %430 = vset.pattern.permute.xlu0 2
    %431 = vperm.xlu0 %430, %v50
    %v432 = vpop.permute.xlu0 %431
    %v434 = vlaneseq
    %v435 = vshrl.u32 %v434, 7
    %v436 = vsub.s32 2, %v435
    %v437 = vrot.slane %v51, %v436
    %v438 = vadd.f32 %v372, %v437
    %v439 = vadd.f32 %v376, %v437
    %v440 = vadd.f32 %v380, %v437
    %v441 = vadd.f32 %v384, %v437
    %v442 = vadd.f32 %v388, %v437
    %v443 = vadd.f32 %v392, %v437
    %v444 = vadd.f32 %v396, %v437
    %v445 = vadd.f32 %v400, %v437
    %v446 = vadd.f32 %v404, %v437
    %v447 = vadd.f32 %v408, %v437
    %v448 = vadd.f32 %v412, %v437
    %v449 = vadd.f32 %v416, %v437
    %v450 = vadd.f32 %v420, %v437
    %v451 = vadd.f32 %v424, %v437
    %v452 = vadd.f32 %v428, %v437
    %v453 = vadd.f32 %v432, %v437
    %v454 = vmul.f32 %v438, 0.2
    %v455 = vmul.f32 %v439, 0.2
    %v456 = vmul.f32 %v440, 0.2
    %v457 = vmul.f32 %v441, 0.2
    %v458 = vmul.f32 %v442, 0.2
    %v459 = vmul.f32 %v443, 0.2
    %v460 = vmul.f32 %v444, 0.2
    %v461 = vmul.f32 %v445, 0.2
    %v462 = vmul.f32 %v446, 0.2
    %v463 = vmul.f32 %v447, 0.2
    %v464 = vmul.f32 %v448, 0.2
    %v465 = vmul.f32 %v449, 0.2
    %v466 = vmul.f32 %v450, 0.2
    %v467 = vmul.f32 %v451, 0.2
    %v468 = vmul.f32 %v452, 0.2
    %v469 = vmul.f32 %v453, 0.2
    %v470 = vmax.f32 %v438, %v454
    %v471 = vmax.f32 %v439, %v455
    %v472 = vmax.f32 %v440, %v456
    %v473 = vmax.f32 %v441, %v457
    %v474 = vmax.f32 %v442, %v458
    %v475 = vmax.f32 %v443, %v459
    %v476 = vmax.f32 %v444, %v460
    %v477 = vmax.f32 %v445, %v461
    %v478 = vmax.f32 %v446, %v462
    %v479 = vmax.f32 %v447, %v463
    %v480 = vmax.f32 %v448, %v464
    %v481 = vmax.f32 %v449, %v465
    %v482 = vmax.f32 %v450, %v466
    %v483 = vmax.f32 %v451, %v467
    %v484 = vmax.f32 %v452, %v468
    %v485 = vmax.f32 %v453, %v469
    %s486 = sld [smem:[#allocation3 + $0x2]]
    %v487 = vstv %s486
    %v488 = vmul.f32 %v487, %v470
    %v489 = vmul.f32 %v487, %v471
    %v490 = vmul.f32 %v487, %v472
    %v491 = vmul.f32 %v487, %v473
    %v492 = vmul.f32 %v487, %v474
    %v493 = vmul.f32 %v487, %v475
    %v494 = vmul.f32 %v487, %v476
    %v495 = vmul.f32 %v487, %v477
    %v496 = vmul.f32 %v487, %v478
    %v497 = vmul.f32 %v487, %v479
    %v498 = vmul.f32 %v487, %v480
    %v499 = vmul.f32 %v487, %v481
    %v500 = vmul.f32 %v487, %v482
    %v501 = vmul.f32 %v487, %v483
    %v502 = vmul.f32 %v487, %v484
    %v503 = vmul.f32 %v487, %v485
    %v504 = vadd.f32 %v354, %v488
    %v505 = vadd.f32 %v355, %v489
    %v506 = vadd.f32 %v356, %v490
    %v507 = vadd.f32 %v357, %v491
    %v508 = vadd.f32 %v358, %v492
    %v509 = vadd.f32 %v359, %v493
    %v510 = vadd.f32 %v360, %v494
    %v511 = vadd.f32 %v361, %v495
    %v512 = vadd.f32 %v362, %v496
    %v513 = vadd.f32 %v363, %v497
    %v514 = vadd.f32 %v364, %v498
    %v515 = vadd.f32 %v365, %v499
    %v516 = vadd.f32 %v366, %v500
    %v517 = vadd.f32 %v367, %v501
    %v518 = vadd.f32 %v368, %v502
    %v519 = vadd.f32 %v369, %v503
    %520 = vset.pattern.permute.xlu0 3
    %521 = vperm.xlu0 %520, %v35
    %v522 = vpop.permute.xlu0 %521
    %524 = vset.pattern.permute.xlu0 3
    %525 = vperm.xlu0 %524, %v36
    %v526 = vpop.permute.xlu0 %525
    %528 = vset.pattern.permute.xlu0 3
    %529 = vperm.xlu0 %528, %v37
    %v530 = vpop.permute.xlu0 %529
    %532 = vset.pattern.permute.xlu0 3
    %533 = vperm.xlu0 %532, %v38
    %v534 = vpop.permute.xlu0 %533
    %536 = vset.pattern.permute.xlu0 3
    %537 = vperm.xlu0 %536, %v39
    %v538 = vpop.permute.xlu0 %537
    %540 = vset.pattern.permute.xlu0 3
    %541 = vperm.xlu0 %540, %v40
    %v542 = vpop.permute.xlu0 %541
    %544 = vset.pattern.permute.xlu0 3
    %545 = vperm.xlu0 %544, %v41
    %v546 = vpop.permute.xlu0 %545
    %548 = vset.pattern.permute.xlu0 3
    %549 = vperm.xlu0 %548, %v42
    %v550 = vpop.permute.xlu0 %549
    %552 = vset.pattern.permute.xlu0 3
    %553 = vperm.xlu0 %552, %v43
    %v554 = vpop.permute.xlu0 %553
    %556 = vset.pattern.permute.xlu0 3
    %557 = vperm.xlu0 %556, %v44
    %v558 = vpop.permute.xlu0 %557
    %560 = vset.pattern.permute.xlu0 3
    %561 = vperm.xlu0 %560, %v45
    %v562 = vpop.permute.xlu0 %561
    %564 = vset.pattern.permute.xlu0 3
    %565 = vperm.xlu0 %564, %v46
    %v566 = vpop.permute.xlu0 %565
    %568 = vset.pattern.permute.xlu0 3
    %569 = vperm.xlu0 %568, %v47
    %v570 = vpop.permute.xlu0 %569
    %572 = vset.pattern.permute.xlu0 3
    %573 = vperm.xlu0 %572, %v48
    %v574 = vpop.permute.xlu0 %573
    %576 = vset.pattern.permute.xlu0 3
    %577 = vperm.xlu0 %576, %v49
    %v578 = vpop.permute.xlu0 %577
    %580 = vset.pattern.permute.xlu0 3
    %581 = vperm.xlu0 %580, %v50
    %v582 = vpop.permute.xlu0 %581
    %v584 = vlaneseq
    %v585 = vshrl.u32 %v584, 7
    %v586 = vsub.s32 3, %v585
    %v587 = vrot.slane %v51, %v586
    %v588 = vadd.f32 %v522, %v587
    %v589 = vadd.f32 %v526, %v587
    %v590 = vadd.f32 %v530, %v587
    %v591 = vadd.f32 %v534, %v587
    %v592 = vadd.f32 %v538, %v587
    %v593 = vadd.f32 %v542, %v587
    %v594 = vadd.f32 %v546, %v587
    %v595 = vadd.f32 %v550, %v587
    %v596 = vadd.f32 %v554, %v587
    %v597 = vadd.f32 %v558, %v587
    %v598 = vadd.f32 %v562, %v587
    %v599 = vadd.f32 %v566, %v587
    %v600 = vadd.f32 %v570, %v587
    %v601 = vadd.f32 %v574, %v587
    %v602 = vadd.f32 %v578, %v587
    %v603 = vadd.f32 %v582, %v587
    %v604 = vmul.f32 %v588, 0.2
    %v605 = vmul.f32 %v589, 0.2
    %v606 = vmul.f32 %v590, 0.2
    %v607 = vmul.f32 %v591, 0.2
    %v608 = vmul.f32 %v592, 0.2
    %v609 = vmul.f32 %v593, 0.2
    %v610 = vmul.f32 %v594, 0.2
    %v611 = vmul.f32 %v595, 0.2
    %v612 = vmul.f32 %v596, 0.2
    %v613 = vmul.f32 %v597, 0.2
    %v614 = vmul.f32 %v598, 0.2
    %v615 = vmul.f32 %v599, 0.2
    %v616 = vmul.f32 %v600, 0.2
    %v617 = vmul.f32 %v601, 0.2
    %v618 = vmul.f32 %v602, 0.2
    %v619 = vmul.f32 %v603, 0.2
    %v620 = vmax.f32 %v588, %v604
    %v621 = vmax.f32 %v589, %v605
    %v622 = vmax.f32 %v590, %v606
    %v623 = vmax.f32 %v591, %v607
    %v624 = vmax.f32 %v592, %v608
    %v625 = vmax.f32 %v593, %v609
    %v626 = vmax.f32 %v594, %v610
    %v627 = vmax.f32 %v595, %v611
    %v628 = vmax.f32 %v596, %v612
    %v629 = vmax.f32 %v597, %v613
    %v630 = vmax.f32 %v598, %v614
    %v631 = vmax.f32 %v599, %v615
    %v632 = vmax.f32 %v600, %v616
    %v633 = vmax.f32 %v601, %v617
    %v634 = vmax.f32 %v602, %v618
    %v635 = vmax.f32 %v603, %v619
    %s636 = sld [smem:[#allocation3 + $0x3]]
    %v637 = vstv %s636
    %v638 = vmul.f32 %v637, %v620
    %v639 = vmul.f32 %v637, %v621
    %v640 = vmul.f32 %v637, %v622
    %v641 = vmul.f32 %v637, %v623
    %v642 = vmul.f32 %v637, %v624
    %v643 = vmul.f32 %v637, %v625
    %v644 = vmul.f32 %v637, %v626
    %v645 = vmul.f32 %v637, %v627
    %v646 = vmul.f32 %v637, %v628
    %v647 = vmul.f32 %v637, %v629
    %v648 = vmul.f32 %v637, %v630
    %v649 = vmul.f32 %v637, %v631
    %v650 = vmul.f32 %v637, %v632
    %v651 = vmul.f32 %v637, %v633
    %v652 = vmul.f32 %v637, %v634
    %v653 = vmul.f32 %v637, %v635
    %v654 = vadd.f32 %v504, %v638
    %v655 = vadd.f32 %v505, %v639
    %v656 = vadd.f32 %v506, %v640
    %v657 = vadd.f32 %v507, %v641
    %v658 = vadd.f32 %v508, %v642
    %v659 = vadd.f32 %v509, %v643
    %v660 = vadd.f32 %v510, %v644
    %v661 = vadd.f32 %v511, %v645
    %v662 = vadd.f32 %v512, %v646
    %v663 = vadd.f32 %v513, %v647
    %v664 = vadd.f32 %v514, %v648
    %v665 = vadd.f32 %v515, %v649
    %v666 = vadd.f32 %v516, %v650
    %v667 = vadd.f32 %v517, %v651
    %v668 = vadd.f32 %v518, %v652
    %v669 = vadd.f32 %v519, %v653
    %v670 = vld [vmem:[%s4] sm:$0xff]
    %v671 = vld [vmem:[%s4 + $0x8] sm:$0xff]
    %v672 = vld [vmem:[%s4 + $0x10] sm:$0xff]
    %v673 = vld [vmem:[%s4 + $0x18] sm:$0xff]
    %v674 = vld [vmem:[%s4 + $0x20] sm:$0xff]
    %v675 = vld [vmem:[%s4 + $0x28] sm:$0xff]
    %v676 = vld [vmem:[%s4 + $0x30] sm:$0xff]
    %v677 = vld [vmem:[%s4 + $0x38] sm:$0xff]
    %v678 = vld [vmem:[%s4 + $0x40] sm:$0xff]
    %v679 = vld [vmem:[%s4 + $0x48] sm:$0xff]
    %v680 = vld [vmem:[%s4 + $0x50] sm:$0xff]
    %v681 = vld [vmem:[%s4 + $0x58] sm:$0xff]
    %v682 = vld [vmem:[%s4 + $0x60] sm:$0xff]
    %v683 = vld [vmem:[%s4 + $0x68] sm:$0xff]
    %v684 = vld [vmem:[%s4 + $0x70] sm:$0xff]
    %v685 = vld [vmem:[%s4 + $0x78] sm:$0xff]
    %vm686 = vcmp.ne.f32.partialorder %v670, 0.0
    %vm687 = vcmp.ne.f32.partialorder %v671, 0.0
    %vm688 = vcmp.ne.f32.partialorder %v672, 0.0
    %vm689 = vcmp.ne.f32.partialorder %v673, 0.0
    %vm690 = vcmp.ne.f32.partialorder %v674, 0.0
    %vm691 = vcmp.ne.f32.partialorder %v675, 0.0
    %vm692 = vcmp.ne.f32.partialorder %v676, 0.0
    %vm693 = vcmp.ne.f32.partialorder %v677, 0.0
    %vm694 = vcmp.ne.f32.partialorder %v678, 0.0
    %vm695 = vcmp.ne.f32.partialorder %v679, 0.0
    %vm696 = vcmp.ne.f32.partialorder %v680, 0.0
    %vm697 = vcmp.ne.f32.partialorder %v681, 0.0
    %vm698 = vcmp.ne.f32.partialorder %v682, 0.0
    %vm699 = vcmp.ne.f32.partialorder %v683, 0.0
    %vm700 = vcmp.ne.f32.partialorder %v684, 0.0
    %vm701 = vcmp.ne.f32.partialorder %v685, 0.0
    %v702 = vsel %vm686, %v654, -1e+09
    %v703 = vsel %vm687, %v655, -1e+09
    %v704 = vsel %vm688, %v656, -1e+09
    %v705 = vsel %vm689, %v657, -1e+09
    %v706 = vsel %vm690, %v658, -1e+09
    %v707 = vsel %vm691, %v659, -1e+09
    %v708 = vsel %vm692, %v660, -1e+09
    %v709 = vsel %vm693, %v661, -1e+09
    %v710 = vsel %vm694, %v662, -1e+09
    %v711 = vsel %vm695, %v663, -1e+09
    %v712 = vsel %vm696, %v664, -1e+09
    %v713 = vsel %vm697, %v665, -1e+09
    %v714 = vsel %vm698, %v666, -1e+09
    %v715 = vsel %vm699, %v667, -1e+09
    %v716 = vsel %vm700, %v668, -1e+09
    %v717 = vsel %vm701, %v669, -1e+09
    %v718 = vmax.f32 %v702, %v706
    %v719 = vmax.f32 %v703, %v707
    %v720 = vmax.f32 %v704, %v708
    %v721 = vmax.f32 %v705, %v709
    %v722 = vmax.f32 %v718, %v710
    %v723 = vmax.f32 %v719, %v711
    %v724 = vmax.f32 %v720, %v712
    %v725 = vmax.f32 %v721, %v713
    %v726 = vmax.f32 %v722, %v714
    %v727 = vmax.f32 %v723, %v715
    %v728 = vmax.f32 %v724, %v716
    %v729 = vmax.f32 %v725, %v717
    %v730 = vmax.f32 %v726, %v727
    %v731 = vmax.f32 %v728, %v729
    %v732 = vmax.f32 %v730, %v731
    %v733 = vrot.slane %v732, 4
    %v734 = vmax.f32 %v732, %v733
    %v735 = vrot.slane %v734, 2
    %v736 = vmax.f32 %v734, %v735
    %v737 = vrot.slane %v736, 1
    %v738 = vmax.f32 %v736, %v737
    %v739 = vsub.f32 %v702, %v738
    %v740 = vsub.f32 %v703, %v738
    %v741 = vsub.f32 %v704, %v738
    %v742 = vsub.f32 %v705, %v738
    %v743 = vsub.f32 %v706, %v738
    %v744 = vsub.f32 %v707, %v738
    %v745 = vsub.f32 %v708, %v738
    %v746 = vsub.f32 %v709, %v738
    %v747 = vsub.f32 %v710, %v738
    %v748 = vsub.f32 %v711, %v738
    %v749 = vsub.f32 %v712, %v738
    %v750 = vsub.f32 %v713, %v738
    %v751 = vsub.f32 %v714, %v738
    %v752 = vsub.f32 %v715, %v738
    %v753 = vsub.f32 %v716, %v738
    %v754 = vsub.f32 %v717, %v738
    %v755 = vmul.f32 %v739, 1.442695
    %v756 = vpow.pop %v755
    %v757 = vmul.f32 %v740, 1.442695
    %v758 = vpow.pop %v757
    %v759 = vmul.f32 %v741, 1.442695
    %v760 = vpow.pop %v759
    %v761 = vmul.f32 %v742, 1.442695
    %v762 = vpow.pop %v761
    %v763 = vmul.f32 %v743, 1.442695
    %v764 = vpow.pop %v763
    %v765 = vmul.f32 %v744, 1.442695
    %v766 = vpow.pop %v765
    %v767 = vmul.f32 %v745, 1.442695
    %v768 = vpow.pop %v767
    %v769 = vmul.f32 %v746, 1.442695
    %v770 = vpow.pop %v769
    %v771 = vmul.f32 %v747, 1.442695
    %v772 = vpow.pop %v771
    %v773 = vmul.f32 %v748, 1.442695
    %v774 = vpow.pop %v773
    %v775 = vmul.f32 %v749, 1.442695
    %v776 = vpow.pop %v775
    %v777 = vmul.f32 %v750, 1.442695
    %v778 = vpow.pop %v777
    %v779 = vmul.f32 %v751, 1.442695
    %v780 = vpow.pop %v779
    %v781 = vmul.f32 %v752, 1.442695
    %v782 = vpow.pop %v781
    %v783 = vmul.f32 %v753, 1.442695
    %v784 = vpow.pop %v783
    %v785 = vmul.f32 %v754, 1.442695
    %v786 = vpow.pop %v785
    %v787 = vadd.f32 %v756, %v758
    %v788 = vadd.f32 %v787, %v760
    %v789 = vadd.f32 %v788, %v762
    %v790 = vadd.f32 %v789, %v764
    %v791 = vadd.f32 %v790, %v766
    %v792 = vadd.f32 %v791, %v768
    %v793 = vadd.f32 %v792, %v770
    %v794 = vadd.f32 %v793, %v772
    %v795 = vadd.f32 %v794, %v774
    %v796 = vadd.f32 %v795, %v776
    %v797 = vadd.f32 %v796, %v778
    %v798 = vadd.f32 %v797, %v780
    %v799 = vadd.f32 %v798, %v782
    %v800 = vadd.f32 %v799, %v784
    %v801 = vadd.f32 %v800, %v786
    %v802 = vrot.slane %v801, 4
    %v803 = vadd.f32 %v801, %v802
    %v804 = vrot.slane %v803, 2
    %v805 = vadd.f32 %v803, %v804
    %v806 = vrot.slane %v805, 1
    %v807 = vadd.f32 %v805, %v806
    %v808 = vrcp.pop %v807
    %v809 = vmul.f32 1.0, %v808
    %v810 = vmul.f32 %v756, %v809
    %v811 = vmul.f32 %v758, %v809
    %v812 = vmul.f32 %v760, %v809
    %v813 = vmul.f32 %v762, %v809
    %v814 = vmul.f32 %v764, %v809
    %v815 = vmul.f32 %v766, %v809
    %v816 = vmul.f32 %v768, %v809
    %v817 = vmul.f32 %v770, %v809
    %v818 = vmul.f32 %v772, %v809
    %v819 = vmul.f32 %v774, %v809
    %v820 = vmul.f32 %v776, %v809
    %v821 = vmul.f32 %v778, %v809
    %v822 = vmul.f32 %v780, %v809
    %v823 = vmul.f32 %v782, %v809
    %v824 = vmul.f32 %v784, %v809
    %v825 = vmul.f32 %v786, %v809
    %826 = vst [vmem:[#allocation6] sm:$0xff] %v810
    %827 = vst [vmem:[#allocation6 + $0x8] sm:$0xff] %v811
    %828 = vst [vmem:[#allocation6 + $0x10] sm:$0xff] %v812
    %829 = vst [vmem:[#allocation6 + $0x18] sm:$0xff] %v813
    %830 = vst [vmem:[#allocation6 + $0x20] sm:$0xff] %v814
    %831 = vst [vmem:[#allocation6 + $0x28] sm:$0xff] %v815
    %832 = vst [vmem:[#allocation6 + $0x30] sm:$0xff] %v816
    %833 = vst [vmem:[#allocation6 + $0x38] sm:$0xff] %v817
    %834 = vst [vmem:[#allocation6 + $0x40] sm:$0xff] %v818
    %835 = vst [vmem:[#allocation6 + $0x48] sm:$0xff] %v819
    %836 = vst [vmem:[#allocation6 + $0x50] sm:$0xff] %v820
    %837 = vst [vmem:[#allocation6 + $0x58] sm:$0xff] %v821
    %838 = vst [vmem:[#allocation6 + $0x60] sm:$0xff] %v822
    %839 = vst [vmem:[#allocation6 + $0x68] sm:$0xff] %v823
    %840 = vst [vmem:[#allocation6 + $0x70] sm:$0xff] %v824
    %841 = vst [vmem:[#allocation6 + $0x78] sm:$0xff] %v825
    // Predicated region
    $region26: #{tpu_custom_call.1} parent=1 // pred_check
      _
    $region27: #{tpu_custom_call.1} parent=1 // pred_check_branch
      %843 = sbr.rel (0) target = $region29
    $region28: #{tpu_custom_call.1} parent=1 // pred_region
      %s845 = ssub.s32 2048, 2048
      %846 = vsyncadd [#allocation4], %s845
      %s847 = sshll.u32 [#allocation6], 4
      %s848 = int_to_ptr.vmem [resolvable:$true] %s847
      %853 = dma.vmem_to_hbm [thread:$0]  %s848, 2048, %s5, [#allocation4], 128, 128, 8
    $region29: #{tpu_custom_call.1} parent=1 // pred_fallthru
      _
    // Predicated region
    $region30: #{tpu_custom_call.1} parent=1 // pred_check
      _
    $region31: #{tpu_custom_call.1} parent=1 // pred_check_branch
      %855 = sbr.rel (0) target = $region33
    $region32: #{tpu_custom_call.1} parent=1 // pred_region
      %856 = dma.done [#allocation4], 2048
    $region33: #{tpu_custom_call.1} parent=1 // pred_fallthru
      _
    %857 = vsyncpa [#allocation4], 1
    %858 = vsyncpa [#allocation5], 1

</llo_original>
